<compile_context>
chip_gen: v6e
topology: v6e:2x2x1
jax: 0.10.0
libtpu: 0.0.40
codegen_flags: <defaults>
</compile_context>

<pallas_src>
import jax
import jax.numpy as jnp
from jax.experimental import pallas as pl
from jax.experimental.pallas import tpu as pltpu


# --- kernel --------------------------------------------------------------------------

def _uncertainty_reg_loss_kernel(pred_ref, target_ref, unc_ref, out_ref):
    # Elementwise hot path: L1 loss, exp re-weighting, uncertainty penalty.
    # Upcast to f32 for the math (needed on v5e which has no bf16 VPU/EUP; free
    # VPU/EUP filler under the DMA elsewhere), downcast at the store.
    p = pred_ref[...].astype(jnp.float32)
    t = target_ref[...].astype(jnp.float32)
    u = unc_ref[...].astype(jnp.float32)
    reg = jnp.abs(p - t)                           # reg_loss_fnc(pred, target)
    out = reg * jnp.exp(-u) + 0.5 * u              # * exp(-unc) + 0.5 * unc
    out_ref[...] = out.astype(out_ref.dtype)


# --- layout helpers ------------------------------------------------------------------

_MAX_BLOCK_BYTES = 2 * 1024 * 1024    # per-buffer block cap (x 4 streams x 2 bufs = 16 MiB)
_MIN_BLOCK_BYTES = 512 * 1024         # don't shrink below the ~85%-roofline plateau
_TARGET_STEPS = 8                     # pipeline ramp + >= 2 steps per v7x TensorCore
_MIN_KERNEL_ELEMS = 8 * 128           # below one (8,128) tile the kernel isn't worth it


def _choose_lanes(total):
    """Widest lane count in {512,256,128} that divides `total` with >= 8 rows."""
    for lanes in (512, 256, 128):
        if total % lanes == 0 and total // lanes >= 8:
            return lanes
    return 128   # caller splits off the (< 128-element) tail / tiny case


def _min_rows_for(itemsize):
    if itemsize >= 4:
        return 8
    if itemsize == 2:
        return 16    # bf16/fp16 pack 2 rows per sublane
    return 32        # int8/fp8 pack 4 rows per sublane


def _round_up(x, m):
    return ((x + m - 1) // m) * m


def _pick_block_rows(rows, lanes, out_itemsize, min_itemsize):
    """Byte-capped block rows; shrink (>= 512 KiB) only to reach >= 8 grid steps."""
    min_rows = _min_rows_for(min_itemsize)
    if rows <= min_rows:
        return rows                      # single full-extent block (legal: equals array dim)
    row_bytes = lanes * out_itemsize
    block_rows = max(min_rows, (_MAX_BLOCK_BYTES // row_bytes) // min_rows * min_rows)
    while (pl.cdiv(rows, block_rows) < _TARGET_STEPS
           and block_rows // 2 >= min_rows
           and (block_rows // 2) * row_bytes >= _MIN_BLOCK_BYTES):
        block_rows //= 2
    block_rows = max(min_rows, (block_rows // min_rows) * min_rows)
    # Never use a block wildly larger than the array; keep (8,128) alignment.
    block_rows = min(block_rows, _round_up(rows, min_rows))
    return block_rows


# --- pallas runner -------------------------------------------------------------------

def _run_slab(p2, t2, u2, out_dtype):
    rows, lanes = p2.shape
    out_itemsize = jnp.dtype(out_dtype).itemsize
    min_itemsize = min(p2.dtype.itemsize, t2.dtype.itemsize,
                       u2.dtype.itemsize, out_itemsize)
    block_rows = _pick_block_rows(rows, lanes, out_itemsize, min_itemsize)
    grid = (pl.cdiv(rows, block_rows),)       # partial last block is masked by Pallas

    spec = pl.BlockSpec((block_rows, lanes), lambda i: (i, 0))
    total = rows * lanes
    bytes_accessed = total * (p2.dtype.itemsize + t2.dtype.itemsize
                              + u2.dtype.itemsize + out_itemsize)

    return pl.pallas_call(
        _uncertainty_reg_loss_kernel,
        out_shape=jax.ShapeDtypeStruct((rows, lanes), out_dtype),
        grid_spec=pltpu.PrefetchScalarGridSpec(
            num_scalar_prefetch=0,
            grid=grid,
            in_specs=[spec, spec, spec],
            out_specs=spec,
        ),
        compiler_params=pltpu.CompilerParams(
            dimension_semantics=("parallel",),
            vmem_limit_bytes=32 * 1024 * 1024,
        ),
        cost_estimate=pl.CostEstimate(
            flops=5 * total,
            transcendentals=total,
            bytes_accessed=bytes_accessed,
        ),
    )(p2, t2, u2)


# --- wrapper -------------------------------------------------------------------------

def uncertainty_reg_loss(pred, target, uncertainty):
    """Pallas implementation of Uncertainty_Reg_Loss.forward (reg_loss_fnc = L1, no reduction)."""
    assert pred.shape == target.shape == uncertainty.shape
    orig_shape = pred.shape
    out_dtype = jnp.result_type(pred.dtype, target.dtype, uncertainty.dtype)

    def xla_elementwise(p, t, u):
        p32 = p.astype(jnp.float32)
        t32 = t.astype(jnp.float32)
        u32 = u.astype(jnp.float32)
        return (jnp.abs(p32 - t32) * jnp.exp(-u32) + 0.5 * u32).astype(out_dtype)

    total = pred.size
    if total < _MIN_KERNEL_ELEMS:
        # Too small for even one (8,128) tile; plain fused XLA is the right tool.
        return xla_elementwise(pred, target, uncertainty)

    lanes = _choose_lanes(total)
    main = (total // lanes) * lanes
    tail = total - main
    rows = main // lanes

    def slab(x):
        flat = x.reshape(-1)                 # contiguous reshape: no HBM copy
        if tail:
            flat = flat[:main]               # contiguous prefix (fallback path only)
        return flat.reshape(rows, lanes)

    out_main = _run_slab(slab(pred), slab(target), slab(uncertainty), out_dtype)
    out_flat = out_main.reshape(-1)

    if tail:
        # < `lanes` leftover elements: fused XLA tail epilogue instead of a
        # materialized padded copy of all three inputs.
        out_tail = xla_elementwise(pred.reshape(-1)[main:],
                                   target.reshape(-1)[main:],
                                   uncertainty.reshape(-1)[main:])
        out_flat = jnp.concatenate([out_flat, out_tail])

    return out_flat.reshape(orig_shape)


# --- reference & tests ---------------------------------------------------------------

def _reference(pred, target, uncertainty):
    reg = jnp.abs(pred.astype(jnp.float32) - target.astype(jnp.float32))
    u = uncertainty.astype(jnp.float32)
    return reg * jnp.exp(-u) + 0.5 * u


if __name__ == "__main__":
    key = jax.random.PRNGKey(0)
    k1, k2, k3 = jax.random.split(key, 3)

    # Small NCHW shapes consistent with a dense regression head.
    B, C, H, W = 2, 4, 16, 16
    pred = jax.random.normal(k1, (B, C, H, W), dtype=jnp.float32)
    target = jax.random.normal(k2, (B, C, H, W), dtype=jnp.float32)
    uncertainty = 0.5 * jax.random.normal(k3, (B, C, H, W), dtype=jnp.float32)

    out = jax.block_until_ready(uncertainty_reg_loss(pred, target, uncertainty))
    assert out.shape == pred.shape
    assert jnp.allclose(out, _reference(pred, target, uncertainty),
                        atol=1e-5, rtol=1e-5), "mismatch vs reference (f32)"

    # Row count (30) not a multiple of the block rows -> exercises the masked
    # partial last block introduced by the cdiv grid.
    shp2 = (1, 3, 40, 128)
    k4, k5, k6 = jax.random.split(k3, 3)
    p2 = jax.random.normal(k4, shp2, dtype=jnp.float32)
    t2 = jax.random.normal(k5, shp2, dtype=jnp.float32)
    u2 = 0.5 * jax.random.normal(k6, shp2, dtype=jnp.float32)
    o2 = jax.block_until_ready(uncertainty_reg_loss(p2, t2, u2))
    assert o2.shape == shp2
    assert jnp.allclose(o2, _reference(p2, t2, u2), atol=1e-5, rtol=1e-5), \
        "mismatch vs reference (partial-block path)"

    # Awkward size (not lane-divisible): kernel on the prefix + fused-XLA tail.
    shp3 = (3, 5, 7, 11)
    k7, k8, k9 = jax.random.split(k6, 3)
    p3 = jax.random.normal(k7, shp3, dtype=jnp.float32)
    t3 = jax.random.normal(k8, shp3, dtype=jnp.float32)
    u3 = 0.5 * jax.random.normal(k9, shp3, dtype=jnp.float32)
    o3 = jax.block_until_ready(uncertainty_reg_loss(p3, t3, u3))
    assert o3.shape == shp3
    assert jnp.allclose(o3, _reference(p3, t3, u3), atol=1e-5, rtol=1e-5), \
        "mismatch vs reference (prefix+tail path)"

    # bf16 inputs: native-dtype I/O, f32 math in-kernel, bf16 output.
    pb = pred.astype(jnp.bfloat16)
    tb = target.astype(jnp.bfloat16)
    ub = uncertainty.astype(jnp.bfloat16)
    ob = jax.block_until_ready(uncertainty_reg_loss(pb, tb, ub))
    assert ob.dtype == jnp.bfloat16 and ob.shape == pb.shape
    refb = _reference(pb, tb, ub)
    assert jnp.allclose(ob.astype(jnp.float32), refb, atol=3e-2, rtol=3e-2), \
        "mismatch vs reference (bf16 path)"

    print("KERNEL_OK")
</pallas_src>

<mosaic_0001>
module attributes {stable_mosaic.version = 11 : i64} {
  func.func @_uncertainty_reg_loss_kernel(%arg0: i32, %arg1: memref<8x256xf32, #tpu.memory_space<vmem>>, %arg2: memref<8x256xf32, #tpu.memory_space<vmem>>, %arg3: memref<8x256xf32, #tpu.memory_space<vmem>>, %arg4: memref<8x256xf32, #tpu.memory_space<vmem>>) attributes {dimension_semantics = [#tpu.dimension_semantics<parallel>], iteration_bounds = array<i64: 1>, scalar_prefetch = 0 : i64, scratch_operands = 0 : i64, tpu.core_type = #tpu.core_type<tc>, window_params = [{transform_indices = @transform_0, window_bounds = array<i64: 8, 256>}, {transform_indices = @transform_1, window_bounds = array<i64: 8, 256>}, {transform_indices = @transform_2, window_bounds = array<i64: 8, 256>}, {transform_indices = @transform_3, window_bounds = array<i64: 8, 256>}]} {
    %c0 = arith.constant 0 : index
    %c0_0 = arith.constant 0 : index
    %0 = vector.load %arg1[%c0, %c0_0] : memref<8x256xf32, #tpu.memory_space<vmem>>, vector<8x256xf32>
    %c0_1 = arith.constant 0 : index
    %c0_2 = arith.constant 0 : index
    %1 = vector.load %arg2[%c0_1, %c0_2] : memref<8x256xf32, #tpu.memory_space<vmem>>, vector<8x256xf32>
    %c0_3 = arith.constant 0 : index
    %c0_4 = arith.constant 0 : index
    %2 = vector.load %arg3[%c0_3, %c0_4] : memref<8x256xf32, #tpu.memory_space<vmem>>, vector<8x256xf32>
    %3 = arith.subf %0, %1 : vector<8x256xf32>
    %4 = math.absf %3 : vector<8x256xf32>
    %cst = arith.constant 0.000000e+00 : f32
    %5 = vector.broadcast %cst : f32 to vector<8x256xf32>
    %6 = arith.subf %5, %2 : vector<8x256xf32>
    %7 = math.exp %6 : vector<8x256xf32>
    %8 = arith.mulf %4, %7 : vector<8x256xf32>
    %cst_5 = arith.constant 5.000000e-01 : f32
    %9 = vector.broadcast %cst_5 : f32 to vector<8x256xf32>
    %10 = arith.mulf %9, %2 : vector<8x256xf32>
    %11 = arith.addf %8, %10 : vector<8x256xf32>
    %c0_6 = arith.constant 0 : index
    %c0_7 = arith.constant 0 : index
    %12 = vector.load %arg4[%c0_6, %c0_7] : memref<8x256xf32, #tpu.memory_space<vmem>>, vector<8x256xf32>
    tpu.vector_store %arg4[%c0_6, %c0_7], %11 {strides = array<i32>} : memref<8x256xf32, #tpu.memory_space<vmem>>, vector<8x256xf32>,
    return
  }
  func.func @transform_0(%arg0: i32) -> (i32, i32) {
    %c0_i32 = arith.constant 0 : i32
    %c0_i32_0 = arith.constant 0 : i32
    return %arg0, %c0_i32 : i32, i32
  }
  func.func @transform_1(%arg0: i32) -> (i32, i32) {
    %c0_i32 = arith.constant 0 : i32
    %c0_i32_0 = arith.constant 0 : i32
    return %arg0, %c0_i32 : i32, i32
  }
  func.func @transform_2(%arg0: i32) -> (i32, i32) {
    %c0_i32 = arith.constant 0 : i32
    %c0_i32_0 = arith.constant 0 : i32
    return %arg0, %c0_i32 : i32, i32
  }
  func.func @transform_3(%arg0: i32) -> (i32, i32) {
    %c0_i32 = arith.constant 0 : i32
    %c0_i32_0 = arith.constant 0 : i32
    return %arg0, %c0_i32 : i32, i32
  }
}

</mosaic_0001>

<llo_original>
// kernel: tpu_custom_call.1
$region0: #{tpu_custom_call.1}
  #allocation0 [shape = 'u32[]', space=smem, size = 0x4, offset = 0x4, fixed_abs, tag = 'smem constant byte address 0x4 - core index']
  #allocation1 [shape = 'u32[144,128]{1,0:T(1,128)}', space=vmem, size = 0x12000, scoped, tag = 'internal scratch']
  %s0 = inlined_call_operand.hbm [shape: f32[8,256], index: 0, kind: input, shape index: {}]
  %s1 = inlined_call_operand.hbm [shape: f32[8,256], index: 1, kind: input, shape index: {}]
  %s2 = inlined_call_operand.hbm [shape: f32[8,256], index: 2, kind: input, shape index: {}]
  %s3 = inlined_call_operand.hbm [shape: f32[8,256], index: 3, kind: output, shape index: {}]
  %s4 = sld [smem:[#allocation0]]
  $region34: #{tpu_custom_call.1} parent=0
    _
  %s6 = ssub.s32 1, %s4
  %s7 = scalar_select 0, %s6, %s4
  $region1: #{tpu_custom_call.1} parent=0
    #allocation2 [shape = 'u8[8192]{0}', space=vmem, size = 0x2000, scoped, tag = 'input window, operand 0, single buffered']
    #allocation3 [shape = 's32[1]{0}', space=sflag, size = 0x4, scoped, tag = 'scoped memory for tpu_custom_call.1']
    #allocation4 [shape = 's32[1]{0}', space=sflag, size = 0x4, scoped, tag = 'scoped memory for tpu_custom_call.1']
    #allocation5 [shape = 'u8[8192]{0}', space=vmem, size = 0x2000, scoped, tag = 'input window, operand 1, single buffered']
    #allocation6 [shape = 's32[1]{0}', space=sflag, size = 0x4, scoped, tag = 'scoped memory for tpu_custom_call.1']
    #allocation7 [shape = 'u8[8192]{0}', space=vmem, size = 0x2000, scoped, tag = 'input window, operand 2, single buffered']
    #allocation8 [shape = 'u8[8192]{0}', space=vmem, size = 0x2000, scoped, tag = 'output window, operand 0, single buffered']
    %8 = vsyncpa [#allocation3], 0
    %9 = vsyncpa [#allocation6], 0
    %10 = vsyncpa [#allocation4], 0
    // Predicated region
    $region2: #{tpu_custom_call.1} parent=1 // pred_check
      _
    $region3: #{tpu_custom_call.1} parent=1 // pred_check_branch
      %12 = sbr.rel (0) target = $region5
    $region4: #{tpu_custom_call.1} parent=1 // pred_region
      %s14 = ssub.s32 256, 256
      %15 = vsyncadd [#allocation3], %s14
      %s17 = sshll.u32 [#allocation2], 4
      %s18 = int_to_ptr.vmem [resolvable:$true] %s17
      %20 = dma.hbm_to_vmem [thread:$0]  %s0, 256, %s18, [#allocation3]
    $region5: #{tpu_custom_call.1} parent=1 // pred_fallthru
      _
    // Predicated region
    $region6: #{tpu_custom_call.1} parent=1 // pred_check
      _
    $region7: #{tpu_custom_call.1} parent=1 // pred_check_branch
      %22 = sbr.rel (0) target = $region9
    $region8: #{tpu_custom_call.1} parent=1 // pred_region
      %s24 = ssub.s32 256, 256
      %25 = vsyncadd [#allocation6], %s24
      %s27 = sshll.u32 [#allocation5], 4
      %s28 = int_to_ptr.vmem [resolvable:$true] %s27
      %30 = dma.hbm_to_vmem [thread:$0]  %s1, 256, %s28, [#allocation6]
    $region9: #{tpu_custom_call.1} parent=1 // pred_fallthru
      _
    // Predicated region
    $region10: #{tpu_custom_call.1} parent=1 // pred_check
      _
    $region11: #{tpu_custom_call.1} parent=1 // pred_check_branch
      %32 = sbr.rel (0) target = $region13
    $region12: #{tpu_custom_call.1} parent=1 // pred_region
      %s34 = ssub.s32 256, 256
      %35 = vsyncadd [#allocation6], %s34
      %s37 = sshll.u32 [#allocation7], 4
      %s38 = int_to_ptr.vmem [resolvable:$true] %s37
      %40 = dma.hbm_to_vmem [thread:$0]  %s2, 256, %s38, [#allocation6]
    $region13: #{tpu_custom_call.1} parent=1 // pred_fallthru
      _
    // Predicated region
    $region14: #{tpu_custom_call.1} parent=1 // pred_check
      _
    $region15: #{tpu_custom_call.1} parent=1 // pred_check_branch
      %42 = sbr.rel (0) target = $region17
    $region16: #{tpu_custom_call.1} parent=1 // pred_region
      %43 = dma.done [#allocation3], 256
    $region17: #{tpu_custom_call.1} parent=1 // pred_fallthru
      _
    // Predicated region
    $region18: #{tpu_custom_call.1} parent=1 // pred_check
      _
    $region19: #{tpu_custom_call.1} parent=1 // pred_check_branch
      %45 = sbr.rel (0) target = $region21
    $region20: #{tpu_custom_call.1} parent=1 // pred_region
      %46 = dma.done [#allocation6], 256
    $region21: #{tpu_custom_call.1} parent=1 // pred_fallthru
      _
    // Predicated region
    $region22: #{tpu_custom_call.1} parent=1 // pred_check
      _
    $region23: #{tpu_custom_call.1} parent=1 // pred_check_branch
      %48 = sbr.rel (0) target = $region25
    $region24: #{tpu_custom_call.1} parent=1 // pred_region
      %49 = dma.done [#allocation6], 256
    $region25: #{tpu_custom_call.1} parent=1 // pred_fallthru
      _
    %v50 = vld [vmem:[#allocation2] sm:$0xff]
    %v51 = vld [vmem:[#allocation2 + $0x8] sm:$0xff]
    %v52 = vld [vmem:[#allocation5] sm:$0xff]
    %v53 = vld [vmem:[#allocation5 + $0x8] sm:$0xff]
    %v54 = vld [vmem:[#allocation7] sm:$0xff]
    %v55 = vld [vmem:[#allocation7 + $0x8] sm:$0xff]
    %v56 = vsub.f32 %v50, %v52
    %v57 = vsub.f32 %v51, %v53
    %v58 = vand.u32 2147483647, %v56
    %v59 = vand.u32 2147483647, %v57
    %v60 = vsub.f32 0.0, %v54
    %v61 = vsub.f32 0.0, %v55
    %v62 = vmul.f32 %v60, 1.442695
    %v63 = vpow.pop %v62
    %v64 = vmul.f32 %v61, 1.442695
    %v65 = vpow.pop %v64
    %v66 = vmul.f32 %v58, %v63
    %v67 = vmul.f32 %v59, %v65
    %v68 = vmul.f32 %v54, 0.5
    %v69 = vmul.f32 %v55, 0.5
    %v70 = vadd.f32 %v66, %v68
    %v71 = vadd.f32 %v67, %v69
    %72 = vst [vmem:[#allocation8] sm:$0xff] %v70
    %73 = vst [vmem:[#allocation8 + $0x8] sm:$0xff] %v71
    // Predicated region
    $region26: #{tpu_custom_call.1} parent=1 // pred_check
      _
    $region27: #{tpu_custom_call.1} parent=1 // pred_check_branch
      %75 = sbr.rel (0) target = $region29
    $region28: #{tpu_custom_call.1} parent=1 // pred_region
      %s77 = ssub.s32 256, 256
      %78 = vsyncadd [#allocation4], %s77
      %s80 = sshll.u32 [#allocation8], 4
      %s81 = int_to_ptr.vmem [resolvable:$true] %s80
      %83 = dma.vmem_to_hbm [thread:$0]  %s81, 256, %s3, [#allocation4]
    $region29: #{tpu_custom_call.1} parent=1 // pred_fallthru
      _
    // Predicated region
    $region30: #{tpu_custom_call.1} parent=1 // pred_check
      _
    $region31: #{tpu_custom_call.1} parent=1 // pred_check_branch
      %85 = sbr.rel (0) target = $region33
    $region32: #{tpu_custom_call.1} parent=1 // pred_region
      %86 = dma.done [#allocation4], 256
    $region33: #{tpu_custom_call.1} parent=1 // pred_fallthru
      _
    %87 = vsyncpa [#allocation3], 1
    %88 = vsyncpa [#allocation6], 1
    %89 = vsyncpa [#allocation4], 1

</llo_original>
